<compile_context>
chip_gen: v7x
topology: tpu7x:2x2x1
jax: 0.10.0
libtpu: 0.0.40
codegen_flags: <defaults>
</compile_context>

<pallas_src>
import functools

import jax
import jax.numpy as jnp
from jax.experimental import pallas as pl
from jax.experimental.pallas import tpu as pltpu


def _nrce_kernel(cls_ref, logits_ref, targets_ref, out_ref, *,
                 n_total, neg_a, inv_scale, reduction):
    i = pl.program_id(0)

    x = logits_ref[...]                                     # [tn, C] native dtype
    tn, c = x.shape
    # bf16 inputs: keep the elementwise chain in bf16 (v6e/v7x bf16 VPU/EUP);
    # everything else computes in f32.  (On v5e bf16 math is emulated — pass
    # f32 logits there.)  Reductions below always accumulate in f32.
    if x.dtype != jnp.bfloat16:
        x = x.astype(jnp.float32)

    m = jnp.max(x, axis=1, keepdims=True)                   # [tn, 1]
    shifted = x - m                                         # [tn, C]

    # Gather the target logit BEFORE the exp: breaks the select's dependence
    # on the EUP result and avoids a second masked full-size copy of exp().
    cls = cls_ref[...]                                      # [1, C] int32 (resident)
    tgt = targets_ref[...]                                  # [tn, 1] int32
    sel = cls == tgt                                        # [tn, C] via broadcast
    logit_y = jnp.sum(jnp.where(sel, shifted, 0.0),
                      axis=1, keepdims=True, dtype=jnp.float32)    # [tn, 1] f32

    e = jnp.exp(shifted)                                    # [tn, C]  (EUP)
    denom = jnp.sum(e, axis=1, keepdims=True, dtype=jnp.float32)   # [tn, 1] f32
    e_y = jnp.exp(logit_y)                                  # [tn, 1] f32

    # Approx reciprocal (EUP vrcp) + one Newton step -> ~f32-exact divide.
    r = pl.reciprocal(denom, approx=True)
    r = r * (2.0 - denom * r)
    p_y = e_y * r                                           # [tn, 1]

    nrce = (neg_a * (1.0 - p_y)) * inv_scale                # [tn, 1] f32

    if reduction in ("mean", "sum"):
        # Mask rows past the true batch size (grid padding from pl.cdiv);
        # garbage/NaN in the unselected branch does not propagate through where.
        row = i * tn + jax.lax.broadcasted_iota(jnp.int32, (tn, 1), 0)
        nrce = jnp.where(row < n_total, nrce, 0.0)
        out_ref[...] = jnp.sum(nrce, keepdims=True)         # [1, 1] partial sum
    else:
        # Lane-dense store: [tn, 1] -> [1, tn] (cheap XLU relayout of tn elems)
        # so the writeback uses dense lane stores instead of last-dim-1 masked
        # stores.  Padded tail rows are sliced off in the wrapper.
        out_ref[...] = jnp.transpose(nrce, (1, 0))


def _vmem_caps():
    """(scoped-vmem limit to request, per-tile padded-element budget)."""
    try:
        info = pltpu.get_tpu_info()
        phys = int(getattr(info, "vmem_capacity_bytes", 64 * 1024 * 1024))
    except Exception:  # conservative fallback if the query is unavailable
        phys = 64 * 1024 * 1024
    if phys >= 128 * 1024 * 1024:
        # v5e / v6e: plenty of VMEM -> bigger tiles, bigger scoped limit.
        return 96 * 1024 * 1024, 2 * 1024 * 1024
    # v7x (64 MiB physical, 32 MiB scoped default): stay conservative.
    return 32 * 1024 * 1024, 1 * 1024 * 1024


def _pick_tile_n(n, c, max_tile_elems):
    """Rows per tile: as big as the VMEM budget allows (amortizes ~0.35us
    per-grid-step overhead), capped so (a) double-buffered inputs plus the
    ~3 live f32 temporaries fit in scoped VMEM and (b) there are >= 2 tiles
    whenever the batch allows it (feeds both v7x TensorCores)."""
    c_pad = max(128, ((c + 127) // 128) * 128)      # lane-padded VMEM width
    rows = max(8, max_tile_elems // c_pad)
    rows = min(rows, 8192)                          # diminishing returns cap
    half = ((((n + 1) // 2) + 7) // 8) * 8          # >= 2 tiles for 2-TC parts
    rows = min(rows, max(8, half))
    rows = min(rows, ((n + 7) // 8) * 8)            # never bigger than batch
    return int(max(8, (rows // 8) * 8))             # sublane multiple


def nrce_loss(logits, targets, *, num_classes=None, A=-4.0, reduction="mean"):
    """Pallas TPU forward pass of NRCELoss (normalized reverse cross entropy)."""
    if A >= 0:
        raise ValueError("NRCE parameter 'A' must be negative.")
    if reduction not in ("mean", "sum", "none"):
        raise ValueError(f"unknown reduction: {reduction}")

    n, c = logits.shape
    if num_classes is None:
        num_classes = c
    scale_denominator = abs(A * (num_classes - 1.0))
    if abs(scale_denominator) < 1e-9:
        scale_denominator = 1.0

    targets_2d = targets.astype(jnp.int32).reshape(n, 1)
    class_ids = jnp.arange(c, dtype=jnp.int32).reshape(1, c)

    itemsize = jnp.dtype(logits.dtype).itemsize
    vmem_limit, max_tile_elems = _vmem_caps()
    tile_n = _pick_tile_n(n, c, max_tile_elems)
    num_tiles = pl.cdiv(n, tile_n)

    in_specs = [
        pl.BlockSpec((1, c), lambda i: (0, 0)),        # class ids (resident)
        pl.BlockSpec((tile_n, c), lambda i: (i, 0)),   # logits tile
        pl.BlockSpec((tile_n, 1), lambda i: (i, 0)),   # targets tile
    ]

    if reduction in ("mean", "sum"):
        # One partial per tile; distinct output block per grid step keeps the
        # batch axis truly parallel (no shared accumulator).
        out_shape = jax.ShapeDtypeStruct((num_tiles, 1), jnp.float32)
        out_spec = pl.BlockSpec((1, 1), lambda i: (i, 0))
        out_bytes = num_tiles * 4
    else:
        # Lane-dense per-sample output: one (1, tile_n) row per tile.
        out_shape = jax.ShapeDtypeStruct((num_tiles, tile_n), jnp.float32)
        out_spec = pl.BlockSpec((1, tile_n), lambda i: (i, 0))
        out_bytes = num_tiles * tile_n * 4

    kernel = functools.partial(
        _nrce_kernel,
        n_total=n,
        neg_a=float(-A),
        inv_scale=float(1.0 / scale_denominator),
        reduction=reduction,
    )

    cost = pl.CostEstimate(
        flops=6 * n * c,
        transcendentals=n * c + n,
        bytes_accessed=n * c * itemsize + n * 4 + c * 4 + out_bytes,
    )

    result = pl.pallas_call(
        kernel,
        out_shape=out_shape,
        grid_spec=pltpu.PrefetchScalarGridSpec(
            num_scalar_prefetch=0,
            grid=(num_tiles,),
            in_specs=in_specs,
            out_specs=out_spec,
        ),
        compiler_params=pltpu.CompilerParams(
            dimension_semantics=("parallel",),   # batch tiles are independent
            vmem_limit_bytes=vmem_limit,
        ),
        cost_estimate=cost,
    )(class_ids, logits, targets_2d)

    if reduction == "mean":
        return jnp.sum(result) / jnp.float32(n)   # divide by the TOTAL N
    if reduction == "sum":
        return jnp.sum(result)
    return result.reshape(-1)[:n]


def nrce_loss_ref(logits, targets, *, num_classes, A=-4.0, reduction="mean"):
    probs = jax.nn.softmax(logits.astype(jnp.float32), axis=1)
    p_y = jnp.take_along_axis(probs, targets[:, None], axis=1)[:, 0]
    rce = (-A) * (1.0 - p_y)
    nrce = rce / abs(A * (num_classes - 1.0))
    if reduction == "mean":
        return nrce.mean()
    if reduction == "sum":
        return nrce.sum()
    return nrce


if __name__ == "__main__":
    key = jax.random.PRNGKey(0)
    k1, k2, k3, k4 = jax.random.split(key, 4)

    # Small shape consistent with the module defaults (CIFAR-style, K=10).
    batch, num_classes = 8, 10
    logits = jax.random.normal(k1, (batch, num_classes), dtype=jnp.float32)
    targets = jax.random.randint(k2, (batch,), 0, num_classes, dtype=jnp.int32)
    for reduction in ("mean", "sum", "none"):
        out = jax.block_until_ready(
            nrce_loss(logits, targets, num_classes=num_classes, A=-4.0,
                      reduction=reduction))
        ref = nrce_loss_ref(logits, targets, num_classes=num_classes, A=-4.0,
                            reduction=reduction)
        assert jnp.allclose(out, ref, atol=1e-5, rtol=1e-5), (reduction, out, ref)

    # Multi-tile case: exercises grid padding/masking, the >=2-tile split and
    # the lane-dense 'none' writeback path.
    batch2, classes2 = 300, 40
    logits2 = jax.random.normal(k3, (batch2, classes2), dtype=jnp.float32)
    targets2 = jax.random.randint(k4, (batch2,), 0, classes2, dtype=jnp.int32)
    for reduction in ("mean", "sum", "none"):
        out = jax.block_until_ready(
            nrce_loss(logits2, targets2, num_classes=classes2, A=-4.0,
                      reduction=reduction))
        ref = nrce_loss_ref(logits2, targets2, num_classes=classes2, A=-4.0,
                            reduction=reduction)
        assert jnp.allclose(out, ref, atol=1e-5, rtol=1e-5), (reduction, out, ref)

    print("KERNEL_OK")
</pallas_src>

<mosaic_0001>
module attributes {stable_mosaic.version = 11 : i64} {
  func.func @_nrce_kernel(%arg0: i32, %arg1: memref<1x10xi32, #tpu.memory_space<vmem>>, %arg2: memref<8x10xf32, #tpu.memory_space<vmem>>, %arg3: memref<8x1xi32, #tpu.memory_space<vmem>>, %arg4: memref<1x1xf32, #tpu.memory_space<vmem>>) attributes {dimension_semantics = [#tpu.dimension_semantics<parallel>], iteration_bounds = array<i64: 1>, scalar_prefetch = 0 : i64, scratch_operands = 0 : i64, tpu.core_type = #tpu.core_type<tc>, window_params = [{pipeline_mode = #tpu.pipeline_mode<synchronous>, transform_indices = @transform_0, window_bounds = array<i64: 1, 10>}, {transform_indices = @transform_1, window_bounds = array<i64: 8, 10>}, {transform_indices = @transform_2, window_bounds = array<i64: 8, 1>}, {transform_indices = @transform_3, window_bounds = array<i64: 1, 1>}]} {
    %c0 = arith.constant 0 : index
    %c0_0 = arith.constant 0 : index
    %0 = vector.load %arg2[%c0, %c0_0] : memref<8x10xf32, #tpu.memory_space<vmem>>, vector<8x10xf32>
    %cst = arith.constant dense<0xFF800000> : vector<8xf32>
    %1 = vector.multi_reduction <maximumf>, %0, %cst [1] : vector<8x10xf32> to vector<8xf32>
    %2 = vector.shape_cast %1 : vector<8xf32> to vector<8x1xf32>
    %3 = vector.broadcast %2 : vector<8x1xf32> to vector<8x10xf32>
    %4 = arith.subf %0, %3 : vector<8x10xf32>
    %c0_1 = arith.constant 0 : index
    %c0_2 = arith.constant 0 : index
    %5 = vector.load %arg1[%c0_1, %c0_2] : memref<1x10xi32, #tpu.memory_space<vmem>>, vector<1x10xi32>
    %c0_3 = arith.constant 0 : index
    %c0_4 = arith.constant 0 : index
    %6 = vector.load %arg3[%c0_3, %c0_4] : memref<8x1xi32, #tpu.memory_space<vmem>>, vector<8x1xi32>
    %7 = vector.broadcast %5 : vector<1x10xi32> to vector<8x10xi32>
    %8 = vector.broadcast %6 : vector<8x1xi32> to vector<8x10xi32>
    %9 = arith.cmpi eq, %7, %8 : vector<8x10xi32>
    %cst_5 = arith.constant 0.000000e+00 : f32
    %10 = vector.broadcast %cst_5 : f32 to vector<8x10xf32>
    %11 = arith.select %9, %4, %10 : vector<8x10xi1>, vector<8x10xf32>
    %cst_6 = arith.constant dense<0.000000e+00> : vector<8xf32>
    %12 = vector.multi_reduction <add>, %11, %cst_6 [1] : vector<8x10xf32> to vector<8xf32>
    %13 = vector.shape_cast %12 : vector<8xf32> to vector<8x1xf32>
    %14 = math.exp %4 : vector<8x10xf32>
    %cst_7 = arith.constant dense<0.000000e+00> : vector<8xf32>
    %15 = vector.multi_reduction <add>, %14, %cst_7 [1] : vector<8x10xf32> to vector<8xf32>
    %16 = vector.shape_cast %15 : vector<8xf32> to vector<8x1xf32>
    %17 = math.exp %13 : vector<8x1xf32>
    %18 = tpu.reciprocal %16 {approx = true} : vector<8x1xf32> -> vector<8x1xf32>
    %19 = arith.mulf %16, %18 : vector<8x1xf32>
    %cst_8 = arith.constant 2.000000e+00 : f32
    %20 = vector.broadcast %cst_8 : f32 to vector<8x1xf32>
    %21 = arith.subf %20, %19 : vector<8x1xf32>
    %22 = arith.mulf %18, %21 : vector<8x1xf32>
    %23 = arith.mulf %17, %22 : vector<8x1xf32>
    %cst_9 = arith.constant 1.000000e+00 : f32
    %24 = vector.broadcast %cst_9 : f32 to vector<8x1xf32>
    %25 = arith.subf %24, %23 : vector<8x1xf32>
    %cst_10 = arith.constant 4.000000e+00 : f32
    %26 = vector.broadcast %cst_10 : f32 to vector<8x1xf32>
    %27 = arith.mulf %26, %25 : vector<8x1xf32>
    %cst_11 = arith.constant 0.027777778 : f32
    %28 = vector.broadcast %cst_11 : f32 to vector<8x1xf32>
    %29 = arith.mulf %27, %28 : vector<8x1xf32>
    %c8_i32 = arith.constant 8 : i32
    %30 = arith.muli %arg0, %c8_i32 : i32
    %31 = tpu.iota {dimensions = array<i32: 0>} : vector<8x1xi32>
    %32 = vector.broadcast %30 : i32 to vector<8x1xi32>
    %33 = arith.addi %32, %31 : vector<8x1xi32>
    %c8_i32_12 = arith.constant 8 : i32
    %34 = vector.broadcast %c8_i32_12 : i32 to vector<8x1xi32>
    %35 = arith.cmpi slt, %33, %34 : vector<8x1xi32>
    %cst_13 = arith.constant 0.000000e+00 : f32
    %36 = vector.broadcast %cst_13 : f32 to vector<8x1xf32>
    %37 = arith.select %35, %29, %36 : vector<8x1xi1>, vector<8x1xf32>
    %38 = vector.shape_cast %37 : vector<8x1xf32> to vector<1x8x1xf32>
    %cst_14 = arith.constant dense<0.000000e+00> : vector<1xf32>
    %39 = vector.multi_reduction <add>, %38, %cst_14 [1, 2] : vector<1x8x1xf32> to vector<1xf32>
    %40 = vector.shape_cast %39 : vector<1xf32> to vector<1x1x1xf32>
    %41 = vector.extract %40[0, 0, 0] : f32 from vector<1x1x1xf32>
    %42 = vector.broadcast %41 : f32 to vector<1x1xf32>
    %c0_15 = arith.constant 0 : index
    %c0_16 = arith.constant 0 : index
    %43 = vector.load %arg4[%c0_15, %c0_16] : memref<1x1xf32, #tpu.memory_space<vmem>>, vector<1x1xf32>
    tpu.vector_store %arg4[%c0_15, %c0_16], %42 {strides = array<i32>} : memref<1x1xf32, #tpu.memory_space<vmem>>, vector<1x1xf32>,
    return
  }
  func.func @transform_0(%arg0: i32) -> (i32, i32) {
    %c0_i32 = arith.constant 0 : i32
    %c0_i32_0 = arith.constant 0 : i32
    %c0_i32_1 = arith.constant 0 : i32
    return %c0_i32, %c0_i32_0 : i32, i32
  }
  func.func @transform_1(%arg0: i32) -> (i32, i32) {
    %c0_i32 = arith.constant 0 : i32
    %c0_i32_0 = arith.constant 0 : i32
    return %arg0, %c0_i32 : i32, i32
  }
  func.func @transform_2(%arg0: i32) -> (i32, i32) {
    %c0_i32 = arith.constant 0 : i32
    %c0_i32_0 = arith.constant 0 : i32
    return %arg0, %c0_i32 : i32, i32
  }
  func.func @transform_3(%arg0: i32) -> (i32, i32) {
    %c0_i32 = arith.constant 0 : i32
    %c0_i32_0 = arith.constant 0 : i32
    return %arg0, %c0_i32 : i32, i32
  }
}

</mosaic_0001>

<llo_original>
// kernel: tpu_custom_call.1
$region0: #{tpu_custom_call.1}
  #allocation0 [shape = 'u32[]', space=smem, size = 0x4, offset = 0x4, fixed_abs, tag = 'smem constant byte address 0x4 - core index']
  #allocation1 [shape = 'u32[144,128]{1,0:T(1,128)}', space=vmem, size = 0x12000, scoped, tag = 'internal scratch']
  %s0 = inlined_call_operand.vmem [shape: s32[1,10], index: 0, kind: input, shape index: {}]
  %s1 = inlined_call_operand.vmem [shape: f32[8,10], index: 1, kind: input, shape index: {}]
  %s2 = inlined_call_operand.vmem [shape: s32[8,1], index: 2, kind: input, shape index: {}]
  %s3 = inlined_call_operand.hbm [shape: f32[1,1], index: 3, kind: output, shape index: {}]
  %s4 = sld [smem:[#allocation0]]
  $region22: #{tpu_custom_call.1} parent=0
    _
  %s6 = ssub.s32 1, %s4
  %s7 = scalar_select 0, %s6, %s4
  $region1: #{tpu_custom_call.1} parent=0
    #allocation2 [shape = 'u8[512]{0}', space=vmem, size = 0x400, scoped, tag = 'output window, operand 0, single buffered']
    #allocation3 [shape = 's32[1]{0}', space=sflag, size = 0x4, scoped, tag = 'scoped memory for tpu_custom_call.1']
    %8 = vsyncpa [#allocation3], 0
    // Predicated region
    $region2: #{tpu_custom_call.1} parent=1 // pred_check
      _
    $region3: #{tpu_custom_call.1} parent=1 // pred_check_branch
      %10 = sbr.rel (0) target = $region5
    $region4: #{tpu_custom_call.1} parent=1 // pred_region
      _
    $region5: #{tpu_custom_call.1} parent=1 // pred_fallthru
      _
    // Predicated region
    $region6: #{tpu_custom_call.1} parent=1 // pred_check
      _
    $region7: #{tpu_custom_call.1} parent=1 // pred_check_branch
      %12 = sbr.rel (0) target = $region9
    $region8: #{tpu_custom_call.1} parent=1 // pred_region
      _
    $region9: #{tpu_custom_call.1} parent=1 // pred_fallthru
      _
    // Predicated region
    $region10: #{tpu_custom_call.1} parent=1 // pred_check
      _
    $region11: #{tpu_custom_call.1} parent=1 // pred_check_branch
      %14 = sbr.rel (0) target = $region13
    $region12: #{tpu_custom_call.1} parent=1 // pred_region
      _
    $region13: #{tpu_custom_call.1} parent=1 // pred_fallthru
      _
    %v15 = vld [vmem:[%s1] sm:$0xff]
    %vm16 = vcmask 80896
    %v17 = vsel %vm16, %v15, -inf
    %18 = vmax.xlane.f32.xlu0 %v17
    %v19 = vpop.xlane.xlu0 %18
    %v20 = vsub.f32 %v15, %v19
    %v21 = vld [vmem:[%s0] sm:$0x1]
    %v22 = vld [vmem:[%s2] sm:$0xff]
    %v23 = vlaneseq
    %v24 = vshrl.u32 %v23, 7
    %v25 = vsub.s32 0, %v24
    %v26 = vrot.slane %v21, %v25
    %27 = vset.pattern.permute.xlu0 0
    %28 = vperm.xlu0 %27, %v22
    %v29 = vpop.permute.xlu0 %28
    %vm30 = vcmp.eq.s32.totalorder %v26, %v29
    %v31 = vsel %vm30, %v20, 0.0
    %v32 = vsel %vm16, %v31, 0.0
    %33 = vadd.xlane.f32.xlu0 %v32
    %v34 = vpop.xlane.xlu0 %33
    %v35 = vmul.f32 %v20, 1.442695
    %v36 = vpow.pop %v35
    %v37 = vsel %vm16, %v36, 0.0
    %38 = vadd.xlane.f32.xlu0 %v37
    %v39 = vpop.xlane.xlu0 %38
    %v40 = vmul.f32 %v34, 1.442695
    %v41 = vpow.pop %v40
    %v42 = vrcp.pop %v39
    %v43 = vmul.f32 %v39, %v42
    %v44 = vsub.f32 2.0, %v43
    %v45 = vmul.f32 %v42, %v44
    %v46 = vmul.f32 %v41, %v45
    %v47 = vsub.f32 1.0, %v46
    %v48 = vmul.f32 %v47, 4.0
    %v49 = vmul.f32 %v48, 0.027777778
    %s50 = smul.u32 0, 8
    %v51 = vlaneseq
    %v52 = vshrl.u32 %v51, 7
    %v53 = vstv %s50
    %v54 = vadd.s32 %v53, %v52
    %vm55 = vcmp.lt.s32.totalorder %v54, 8
    %v56 = vsel %vm55, %v49, 0.0
    %vm57 = vcmask 7168
    %v58 = vsel %vm57, %v56, 0.0
    %59 = vadd.xlane.f32.xlu0 %v58
    %v60 = vpop.xlane.xlu0 %59
    %v61 = vrot.slane %v60, 4
    %v62 = vadd.f32 %v60, %v61
    %v63 = vrot.slane %v62, 2
    %v64 = vadd.f32 %v62, %v63
    %v65 = vrot.slane %v64, 1
    %v66 = vadd.f32 %v64, %v65
    %s67 = vtos %v66
    %v68 = vstv %s67
    %vm69 = vcmask 0
    %70 = vst.msk [vmem:[#allocation2] sm:$0x1] %vm69, %v68
    // Predicated region
    $region14: #{tpu_custom_call.1} parent=1 // pred_check
      _
    $region15: #{tpu_custom_call.1} parent=1 // pred_check_branch
      %72 = sbr.rel (0) target = $region17
    $region16: #{tpu_custom_call.1} parent=1 // pred_region
      %s74 = ssub.s32 16, 16
      %75 = vsyncadd [#allocation3], %s74
      %s77 = sshll.u32 [#allocation2], 4
      %s78 = int_to_ptr.vmem [resolvable:$true] %s77
      %80 = dma.vmem_to_hbm [thread:$0]  %s78, 16, %s3, [#allocation3]
    $region17: #{tpu_custom_call.1} parent=1 // pred_fallthru
      _
    // Predicated region
    $region18: #{tpu_custom_call.1} parent=1 // pred_check
      _
    $region19: #{tpu_custom_call.1} parent=1 // pred_check_branch
      %82 = sbr.rel (0) target = $region21
    $region20: #{tpu_custom_call.1} parent=1 // pred_region
      %83 = dma.done [#allocation3], 16
    $region21: #{tpu_custom_call.1} parent=1 // pred_fallthru
      _
    %84 = vsyncpa [#allocation3], 1

</llo_original>
